<compile_context>
chip_gen: v5e
topology: v5e:2x2
jax: 0.10.0
libtpu: 0.0.40
codegen_flags: <defaults>
</compile_context>

<pallas_src>
import functools

import jax
import jax.numpy as jnp
from jax.experimental import pallas as pl
from jax.experimental.pallas import tpu as pltpu


_LANE = 128
_SUBLANE = 8


def _round_up(n, m):
    return ((n + m - 1) // m) * m


def _mlp_kernel(x_ref, w1_ref, b1_ref, w2_ref, b2_ref, w3_ref, b3_ref, o_ref,
                *, negative_slope):
    cd = w1_ref.dtype  # compute/storage dtype (bf16)
    x = x_ref[...]

    # linear1 + LeakyReLU(0.05): MXU matmul with f32 accumulation, activation in f32.
    h1 = jnp.dot(x, w1_ref[...], preferred_element_type=jnp.float32)
    h1 = h1 + b1_ref[...].astype(jnp.float32)
    h1 = jnp.where(h1 >= 0, h1, negative_slope * h1)

    # linear2 + LeakyReLU(0.05)
    h2 = jnp.dot(h1.astype(cd), w2_ref[...], preferred_element_type=jnp.float32)
    h2 = h2 + b2_ref[...].astype(jnp.float32)
    h2 = jnp.where(h2 >= 0, h2, negative_slope * h2)

    # linear3 (no activation). Dropout in the PyTorch module is never applied in
    # forward() (and would be identity in eval mode anyway).
    out = jnp.dot(h2.astype(cd), w3_ref[...], preferred_element_type=jnp.float32)
    out = out + b3_ref[...].astype(jnp.float32)
    o_ref[...] = out.astype(o_ref.dtype)


def prepare_mlp_params(params, compute_dtype=jnp.bfloat16):
    """One-time layout prep (hoisted out of the per-call forward path):
       - transpose PyTorch-style (out, in) weights to (in, out),
       - zero-pad hidden/output dims up to multiples of 128 (lane-dense tiles),
       - cast storage to bf16 (f32 accumulation happens inside the kernel)."""
    w1, b1 = params["w1"], params["b1"]
    w2, b2 = params["w2"], params["b2"]
    w3, b3 = params["w3"], params["b3"]

    num_i = w1.shape[1]
    num_h1, num_h2, num_o = w1.shape[0], w2.shape[0], w3.shape[0]
    h1p = _round_up(num_h1, _LANE)
    h2p = _round_up(num_h2, _LANE)
    nop = _round_up(num_o, _LANE)

    def pad2(a, rows, cols):
        return jnp.pad(a, ((0, rows - a.shape[0]), (0, cols - a.shape[1])))

    w1t = pad2(w1.T, num_i, h1p).astype(compute_dtype)
    w2t = pad2(w2.T, h1p, h2p).astype(compute_dtype)
    w3t = pad2(w3.T, h2p, nop).astype(compute_dtype)
    b1p = pad2(b1.reshape(1, -1), 1, h1p).astype(compute_dtype)
    b2p = pad2(b2.reshape(1, -1), 1, h2p).astype(compute_dtype)
    b3p = pad2(b3.reshape(1, -1), 1, nop).astype(compute_dtype)

    return {"w1t": w1t, "b1": b1p, "w2t": w2t, "b2": b2p, "w3t": w3t, "b3": b3p,
            "num_o": num_o}


def mlp_forward(x, prepared, *, negative_slope=0.05, block_batch=512,
                vmem_limit_bytes=32 * 1024 * 1024):
    """Pallas MLP forward. x: (B, num_i) f32. `prepared` comes from prepare_mlp_params."""
    B, num_i = x.shape
    w1t, w2t, w3t = prepared["w1t"], prepared["w2t"], prepared["w3t"]
    b1, b2, b3 = prepared["b1"], prepared["b2"], prepared["b3"]
    num_o = prepared["num_o"]
    assert w1t.shape[0] == num_i
    h1p, h2p, nop = w1t.shape[1], w2t.shape[1], w3t.shape[1]

    cd = w1t.dtype
    xc = x.astype(cd)
    out_dtype = x.dtype
    cd_bytes = jnp.dtype(cd).itemsize
    out_bytes = jnp.dtype(out_dtype).itemsize

    # Batch tile: multiple of 8 sublanes; capped so the double-buffered x/out
    # tiles plus (double-buffered) resident weights fit the scoped VMEM budget.
    weight_bytes = 2 * cd_bytes * (w1t.size + w2t.size + w3t.size
                                   + b1.size + b2.size + b3.size)
    per_row_bytes = 2 * (num_i * cd_bytes + nop * out_bytes)
    budget = int(0.75 * vmem_limit_bytes)
    tb_cap = max(_SUBLANE,
                 ((budget - weight_bytes) // per_row_bytes) // _SUBLANE * _SUBLANE)
    tb = min(block_batch, B, tb_cap)
    if B >= _SUBLANE:
        tb = max(_SUBLANE, (tb // _SUBLANE) * _SUBLANE)
    else:
        tb = B  # tiny batch: block equals the full dim

    grid = (pl.cdiv(B, tb),)
    kernel = functools.partial(_mlp_kernel, negative_slope=negative_slope)

    out_padded = pl.pallas_call(
        kernel,
        out_shape=jax.ShapeDtypeStruct((B, nop), out_dtype),
        grid_spec=pltpu.PrefetchScalarGridSpec(
            num_scalar_prefetch=0,
            grid=grid,
            in_specs=[
                # batch tile of the input (pipelined across grid steps)
                pl.BlockSpec((tb, num_i), lambda i: (i, 0)),
                # weights / biases: constant block index -> fetched once, resident
                pl.BlockSpec((num_i, h1p), lambda i: (0, 0)),
                pl.BlockSpec((1, h1p), lambda i: (0, 0)),
                pl.BlockSpec((h1p, h2p), lambda i: (0, 0)),
                pl.BlockSpec((1, h2p), lambda i: (0, 0)),
                pl.BlockSpec((h2p, nop), lambda i: (0, 0)),
                pl.BlockSpec((1, nop), lambda i: (0, 0)),
            ],
            out_specs=pl.BlockSpec((tb, nop), lambda i: (i, 0)),
        ),
        compiler_params=pltpu.CompilerParams(
            dimension_semantics=("parallel",),
            vmem_limit_bytes=vmem_limit_bytes,
        ),
    )(xc, w1t, b1, w2t, b2, w3t, b3)

    # Strip lane padding (glue; stays in XLA).
    return out_padded[:, :num_o]


def init_mlp_params(key, num_i, num_h1, num_h2, num_o, dtype=jnp.float32):
    """Deterministic init mimicking nn.Linear default: U(-1/sqrt(fan_in), 1/sqrt(fan_in))."""
    ks = jax.random.split(key, 6)

    def lin(kw, kb, fan_in, fan_out):
        bound = 1.0 / jnp.sqrt(jnp.asarray(fan_in, dtype))
        w = jax.random.uniform(kw, (fan_out, fan_in), dtype, -bound, bound)
        b = jax.random.uniform(kb, (fan_out,), dtype, -bound, bound)
        return w, b

    w1, b1 = lin(ks[0], ks[1], num_i, num_h1)
    w2, b2 = lin(ks[2], ks[3], num_h1, num_h2)
    w3, b3 = lin(ks[4], ks[5], num_h2, num_o)
    return {"w1": w1, "b1": b1, "w2": w2, "b2": b2, "w3": w3, "b3": b3}


def mlp_ref_prepared(x, prepared, negative_slope=0.05):
    """Plain-JAX reference using the SAME numerics as the kernel
    (bf16 storage, f32 accumulation) for a tight correctness check."""
    cd = prepared["w1t"].dtype
    xc = x.astype(cd)
    h1 = jnp.dot(xc, prepared["w1t"], preferred_element_type=jnp.float32)
    h1 = h1 + prepared["b1"].astype(jnp.float32)
    h1 = jnp.where(h1 >= 0, h1, negative_slope * h1)
    h2 = jnp.dot(h1.astype(cd), prepared["w2t"], preferred_element_type=jnp.float32)
    h2 = h2 + prepared["b2"].astype(jnp.float32)
    h2 = jnp.where(h2 >= 0, h2, negative_slope * h2)
    out = jnp.dot(h2.astype(cd), prepared["w3t"], preferred_element_type=jnp.float32)
    out = out + prepared["b3"].astype(jnp.float32)
    return out[:, :prepared["num_o"]].astype(x.dtype)


if __name__ == "__main__":
    key = jax.random.PRNGKey(0)
    kx, kp = jax.random.split(key)

    batch, num_i, num_h1, num_h2, num_o = 256, 32, 64, 48, 16
    x = jax.random.normal(kx, (batch, num_i), jnp.float32)
    params = init_mlp_params(kp, num_i, num_h1, num_h2, num_o)

    # One-time layout prep (transpose to (in,out), pad to 128 lanes, bf16 cast).
    prepared = prepare_mlp_params(params)

    # block_batch=64 -> grid of 4 steps: pipelined DMA and 2 steps per TC on v7x.
    out = mlp_forward(x, prepared, block_batch=64)
    out = jax.block_until_ready(out)

    ref = mlp_ref_prepared(x, prepared)
    assert out.shape == (batch, num_o)
    assert jnp.allclose(out, ref, atol=1e-3, rtol=1e-3), float(jnp.max(jnp.abs(out - ref)))

    print("KERNEL_OK")
</pallas_src>

<mosaic_0001>
module attributes {stable_mosaic.version = 11 : i64} {
  func.func @_mlp_kernel(%arg0: i32, %arg1: memref<64x32xbf16, #tpu.memory_space<vmem>>, %arg2: memref<32x128xbf16, #tpu.memory_space<vmem>>, %arg3: memref<1x128xbf16, #tpu.memory_space<vmem>>, %arg4: memref<128x128xbf16, #tpu.memory_space<vmem>>, %arg5: memref<1x128xbf16, #tpu.memory_space<vmem>>, %arg6: memref<128x128xbf16, #tpu.memory_space<vmem>>, %arg7: memref<1x128xbf16, #tpu.memory_space<vmem>>, %arg8: memref<64x128xf32, #tpu.memory_space<vmem>>) attributes {dimension_semantics = [#tpu.dimension_semantics<parallel>], iteration_bounds = array<i64: 4>, scalar_prefetch = 0 : i64, scratch_operands = 0 : i64, tpu.core_type = #tpu.core_type<tc>, window_params = [{transform_indices = @transform_0, window_bounds = array<i64: 64, 32>}, {pipeline_mode = #tpu.pipeline_mode<synchronous>, transform_indices = @transform_1, window_bounds = array<i64: 32, 128>}, {pipeline_mode = #tpu.pipeline_mode<synchronous>, transform_indices = @transform_2, window_bounds = array<i64: 1, 128>}, {pipeline_mode = #tpu.pipeline_mode<synchronous>, transform_indices = @transform_3, window_bounds = array<i64: 128, 128>}, {pipeline_mode = #tpu.pipeline_mode<synchronous>, transform_indices = @transform_4, window_bounds = array<i64: 1, 128>}, {pipeline_mode = #tpu.pipeline_mode<synchronous>, transform_indices = @transform_5, window_bounds = array<i64: 128, 128>}, {pipeline_mode = #tpu.pipeline_mode<synchronous>, transform_indices = @transform_6, window_bounds = array<i64: 1, 128>}, {transform_indices = @transform_7, window_bounds = array<i64: 64, 128>}]} {
    %c0 = arith.constant 0 : index
    %c0_0 = arith.constant 0 : index
    %0 = vector.load %arg1[%c0, %c0_0] : memref<64x32xbf16, #tpu.memory_space<vmem>>, vector<64x32xbf16>
    %c0_1 = arith.constant 0 : index
    %c0_2 = arith.constant 0 : index
    %1 = vector.load %arg2[%c0_1, %c0_2] : memref<32x128xbf16, #tpu.memory_space<vmem>>, vector<32x128xbf16>
    %cst = arith.constant dense<0.000000e+00> : vector<64x128xf32>
    %2 = tpu.matmul %0, %1, %cst {dimension_numbers = #tpu.dot_dimension_numbers<[1], [0], [0], [1], [0, 0, 1, 1], [], []>} : vector<64x32xbf16>, vector<32x128xbf16>, vector<64x128xf32> -> vector<64x128xf32>
    %c0_3 = arith.constant 0 : index
    %c0_4 = arith.constant 0 : index
    %3 = vector.load %arg3[%c0_3, %c0_4] : memref<1x128xbf16, #tpu.memory_space<vmem>>, vector<1x128xbf16>
    %4 = arith.extf %3 : vector<1x128xbf16> to vector<1x128xf32>
    %5 = vector.broadcast %4 : vector<1x128xf32> to vector<64x128xf32>
    %6 = arith.addf %2, %5 : vector<64x128xf32>
    %cst_5 = arith.constant 0.000000e+00 : f32
    %7 = vector.broadcast %cst_5 : f32 to vector<64x128xf32>
    %8 = arith.cmpf oge, %6, %7 : vector<64x128xf32>
    %cst_6 = arith.constant 5.000000e-02 : f32
    %9 = vector.broadcast %cst_6 : f32 to vector<64x128xf32>
    %10 = arith.mulf %9, %6 : vector<64x128xf32>
    %11 = arith.select %8, %6, %10 : vector<64x128xi1>, vector<64x128xf32>
    %12 = arith.truncf %11 : vector<64x128xf32> to vector<64x128xbf16>
    %c0_7 = arith.constant 0 : index
    %c0_8 = arith.constant 0 : index
    %13 = vector.load %arg4[%c0_7, %c0_8] : memref<128x128xbf16, #tpu.memory_space<vmem>>, vector<128x128xbf16>
    %cst_9 = arith.constant dense<0.000000e+00> : vector<64x128xf32>
    %14 = tpu.matmul %12, %13, %cst_9 {dimension_numbers = #tpu.dot_dimension_numbers<[1], [0], [0], [1], [0, 0, 1, 1], [], []>} : vector<64x128xbf16>, vector<128x128xbf16>, vector<64x128xf32> -> vector<64x128xf32>
    %c0_10 = arith.constant 0 : index
    %c0_11 = arith.constant 0 : index
    %15 = vector.load %arg5[%c0_10, %c0_11] : memref<1x128xbf16, #tpu.memory_space<vmem>>, vector<1x128xbf16>
    %16 = arith.extf %15 : vector<1x128xbf16> to vector<1x128xf32>
    %17 = vector.broadcast %16 : vector<1x128xf32> to vector<64x128xf32>
    %18 = arith.addf %14, %17 : vector<64x128xf32>
    %cst_12 = arith.constant 0.000000e+00 : f32
    %19 = vector.broadcast %cst_12 : f32 to vector<64x128xf32>
    %20 = arith.cmpf oge, %18, %19 : vector<64x128xf32>
    %cst_13 = arith.constant 5.000000e-02 : f32
    %21 = vector.broadcast %cst_13 : f32 to vector<64x128xf32>
    %22 = arith.mulf %21, %18 : vector<64x128xf32>
    %23 = arith.select %20, %18, %22 : vector<64x128xi1>, vector<64x128xf32>
    %24 = arith.truncf %23 : vector<64x128xf32> to vector<64x128xbf16>
    %c0_14 = arith.constant 0 : index
    %c0_15 = arith.constant 0 : index
    %25 = vector.load %arg6[%c0_14, %c0_15] : memref<128x128xbf16, #tpu.memory_space<vmem>>, vector<128x128xbf16>
    %cst_16 = arith.constant dense<0.000000e+00> : vector<64x128xf32>
    %26 = tpu.matmul %24, %25, %cst_16 {dimension_numbers = #tpu.dot_dimension_numbers<[1], [0], [0], [1], [0, 0, 1, 1], [], []>} : vector<64x128xbf16>, vector<128x128xbf16>, vector<64x128xf32> -> vector<64x128xf32>
    %c0_17 = arith.constant 0 : index
    %c0_18 = arith.constant 0 : index
    %27 = vector.load %arg7[%c0_17, %c0_18] : memref<1x128xbf16, #tpu.memory_space<vmem>>, vector<1x128xbf16>
    %28 = arith.extf %27 : vector<1x128xbf16> to vector<1x128xf32>
    %29 = vector.broadcast %28 : vector<1x128xf32> to vector<64x128xf32>
    %30 = arith.addf %26, %29 : vector<64x128xf32>
    %c0_19 = arith.constant 0 : index
    %c0_20 = arith.constant 0 : index
    %31 = vector.load %arg8[%c0_19, %c0_20] : memref<64x128xf32, #tpu.memory_space<vmem>>, vector<64x128xf32>
    tpu.vector_store %arg8[%c0_19, %c0_20], %30 {strides = array<i32>} : memref<64x128xf32, #tpu.memory_space<vmem>>, vector<64x128xf32>,
    return
  }
  func.func @transform_0(%arg0: i32) -> (i32, i32) {
    %c0_i32 = arith.constant 0 : i32
    %c0_i32_0 = arith.constant 0 : i32
    return %arg0, %c0_i32 : i32, i32
  }
  func.func @transform_1(%arg0: i32) -> (i32, i32) {
    %c0_i32 = arith.constant 0 : i32
    %c0_i32_0 = arith.constant 0 : i32
    %c0_i32_1 = arith.constant 0 : i32
    return %c0_i32, %c0_i32_0 : i32, i32
  }
  func.func @transform_2(%arg0: i32) -> (i32, i32) {
    %c0_i32 = arith.constant 0 : i32
    %c0_i32_0 = arith.constant 0 : i32
    %c0_i32_1 = arith.constant 0 : i32
    return %c0_i32, %c0_i32_0 : i32, i32
  }
  func.func @transform_3(%arg0: i32) -> (i32, i32) {
    %c0_i32 = arith.constant 0 : i32
    %c0_i32_0 = arith.constant 0 : i32
    %c0_i32_1 = arith.constant 0 : i32
    return %c0_i32, %c0_i32_0 : i32, i32
  }
  func.func @transform_4(%arg0: i32) -> (i32, i32) {
    %c0_i32 = arith.constant 0 : i32
    %c0_i32_0 = arith.constant 0 : i32
    %c0_i32_1 = arith.constant 0 : i32
    return %c0_i32, %c0_i32_0 : i32, i32
  }
  func.func @transform_5(%arg0: i32) -> (i32, i32) {
    %c0_i32 = arith.constant 0 : i32
    %c0_i32_0 = arith.constant 0 : i32
    %c0_i32_1 = arith.constant 0 : i32
    return %c0_i32, %c0_i32_0 : i32, i32
  }
  func.func @transform_6(%arg0: i32) -> (i32, i32) {
    %c0_i32 = arith.constant 0 : i32
    %c0_i32_0 = arith.constant 0 : i32
    %c0_i32_1 = arith.constant 0 : i32
    return %c0_i32, %c0_i32_0 : i32, i32
  }
  func.func @transform_7(%arg0: i32) -> (i32, i32) {
    %c0_i32 = arith.constant 0 : i32
    %c0_i32_0 = arith.constant 0 : i32
    return %arg0, %c0_i32 : i32, i32
  }
}

</mosaic_0001>

<llo_original>
// kernel: tpu_custom_call.1
$region0: #{tpu_custom_call.1}
  #allocation0 [shape = 'u32[]', space=smem, size = 0x4, offset = 0x4, fixed_abs, tag = 'smem constant byte address 0x4 - core index']
  #allocation1 [shape = 'u32[72,128]{1,0:T(1,128)}', space=vmem, size = 0x9000, scoped, tag = 'internal scratch']
  %s0 = inlined_call_operand.vmem [shape: bf16[256,32], index: 0, kind: input, shape index: {}]
  %s1 = inlined_call_operand.vmem [shape: bf16[32,128], index: 1, kind: input, shape index: {}]
  %s2 = inlined_call_operand.vmem [shape: bf16[1,128], index: 2, kind: input, shape index: {}]
  %s3 = inlined_call_operand.vmem [shape: bf16[128,128], index: 3, kind: input, shape index: {}]
  %s4 = inlined_call_operand.vmem [shape: bf16[1,128], index: 4, kind: input, shape index: {}]
  %s5 = inlined_call_operand.vmem [shape: bf16[128,128], index: 5, kind: input, shape index: {}]
  %s6 = inlined_call_operand.vmem [shape: bf16[1,128], index: 6, kind: input, shape index: {}]
  %s7 = inlined_call_operand.hbm [shape: f32[256,128], index: 7, kind: output, shape index: {}]
  %s8 = sld [smem:[#allocation0]]
  $region61: #{tpu_custom_call.1} parent=0
    _
  %s10 = ssub.s32 1, %s8
  %s11 = scalar_select 0, %s10, %s8
  $region1: #{tpu_custom_call.1} parent=0
    #allocation2 [shape = 'u8[65536]{0}', space=vmem, size = 0x10000, scoped, tag = 'output window, operand 0']
    #allocation3 [shape = 's32[2]{0}', space=sflag, size = 0x8, scoped, tag = 'scoped memory for tpu_custom_call.1']
    %12 = vsyncpa [#allocation3], 0
    %s13 = scalar_lea.sflag [#allocation3], 1
    %14 = vsyncpa %s13, 0
    loop: start=0, step=1, limit=6
    $region2: #{tpu_custom_call.1} parent=1 // loop_pre_header
      _
    $region3: #{tpu_custom_call.1} parent=1 // loop_header
      %s16 = sphi 0, %s20
      %p17 = scmp.ge.s32.totalorder %s16, 6
      %s26 = sphi 0, %s28
      %s29 = sphi 0, %s26
      %s30 = sphi 0, %s29
      %s46 = sphi 0, %s30
      %s50 = sphi 0, %s50
      %s52 = sphi 0, %s50
      %s53 = sphi 0, %s52
      %s67 = sphi 0, %s53
      %s71 = sphi 0, %s71
      %s73 = sphi 0, %s71
      %s74 = sphi 0, %s73
      %s88 = sphi 0, %s74
      %s92 = sphi 0, %s92
      %s94 = sphi 0, %s92
      %s95 = sphi 0, %s94
      %s109 = sphi 0, %s95
      %s113 = sphi 0, %s113
      %s115 = sphi 0, %s113
      %s116 = sphi 0, %s115
      %s130 = sphi 0, %s116
      %s134 = sphi 0, %s134
      %s136 = sphi 0, %s134
      %s137 = sphi 0, %s136
      %s151 = sphi 0, %s137
      %s155 = sphi 0, %s155
      %s157 = sphi 0, %s155
      %s158 = sphi 0, %s157
      %s172 = sphi 0, %s158
      %s178 = sphi 0, %s180
      %s181 = sphi 0, %s178
      %s182 = sphi 0, %s181
      %s198 = sphi 0, %s182
    $region4: #{tpu_custom_call.1} parent=1 // loop_header_branch
      %19 = sbr.rel (%p17) target = $region8
    $region5: #{tpu_custom_call.1} parent=1 // loop_body
      %s21 = ssub.s32 %s16, 1
      %s22 = ssub.s32 %s16, 2
      %s23 = sadd.s32 %s16, 1
      %s24 = ssub.s32 %s16, %s23
      %p25 = scmp.eq.s32.totalorder %s24, 0
      %s27 = sadd.s32 %s26, 1
      %s28 = scalar_select %p25, %s26, %s27
      %p31 = pneg %p25
      %p32 = scmp.eq.s32.totalorder %s16, 3
      %p33 = por %p31, %p32
      %p34 = scmp.ne.s32.totalorder %s26, %s29
      %p35 = scmp.eq.s32.totalorder %s16, 0
      %p36 = por %p34, %p35
      %p37 = scmp.ne.s32.totalorder %s26, %s29
      %p38 = scmp.eq.s32.totalorder %s21, 3
      %p39 = por %p37, %p38
      %p40 = scmp.ne.s32.totalorder %s29, %s30
      %p41 = scmp.eq.s32.totalorder %s21, 0
      %p42 = por %p40, %p41
      %p43 = scmp.ne.s32.totalorder %s29, %s30
      %p44 = scmp.eq.s32.totalorder %s22, 3
      %p45 = por %p43, %p44
      %p47 = scmp.ne.s32.totalorder %s30, %s46
      %p48 = scmp.eq.s32.totalorder %s22, 0
      %p49 = por %p47, %p48
      %s51 = sadd.s32 %s50, 1
      %p54 = scmp.eq.s32.totalorder %s16, 3
      %p55 = scmp.ne.s32.totalorder %s50, %s52
      %p56 = scmp.eq.s32.totalorder %s16, 0
      %p57 = por %p55, %p56
      %p58 = scmp.ne.s32.totalorder %s50, %s52
      %p59 = scmp.eq.s32.totalorder %s21, 3
      %p60 = por %p58, %p59
      %p61 = scmp.ne.s32.totalorder %s52, %s53
      %p62 = scmp.eq.s32.totalorder %s21, 0
      %p63 = por %p61, %p62
      %p64 = scmp.ne.s32.totalorder %s52, %s53
      %p65 = scmp.eq.s32.totalorder %s22, 3
      %p66 = por %p64, %p65
      %p68 = scmp.ne.s32.totalorder %s53, %s67
      %p69 = scmp.eq.s32.totalorder %s22, 0
      %p70 = por %p68, %p69
      %s72 = sadd.s32 %s71, 1
      %p75 = scmp.eq.s32.totalorder %s16, 3
      %p76 = scmp.ne.s32.totalorder %s71, %s73
      %p77 = scmp.eq.s32.totalorder %s16, 0
      %p78 = por %p76, %p77
      %p79 = scmp.ne.s32.totalorder %s71, %s73
      %p80 = scmp.eq.s32.totalorder %s21, 3
      %p81 = por %p79, %p80
      %p82 = scmp.ne.s32.totalorder %s73, %s74
      %p83 = scmp.eq.s32.totalorder %s21, 0
      %p84 = por %p82, %p83
      %p85 = scmp.ne.s32.totalorder %s73, %s74
      %p86 = scmp.eq.s32.totalorder %s22, 3
      %p87 = por %p85, %p86
      %p89 = scmp.ne.s32.totalorder %s74, %s88
      %p90 = scmp.eq.s32.totalorder %s22, 0
      %p91 = por %p89, %p90
      %s93 = sadd.s32 %s92, 1
      %p96 = scmp.eq.s32.totalorder %s16, 3
      %p97 = scmp.ne.s32.totalorder %s92, %s94
      %p98 = scmp.eq.s32.totalorder %s16, 0
      %p99 = por %p97, %p98
      %p100 = scmp.ne.s32.totalorder %s92, %s94
      %p101 = scmp.eq.s32.totalorder %s21, 3
      %p102 = por %p100, %p101
      %p103 = scmp.ne.s32.totalorder %s94, %s95
      %p104 = scmp.eq.s32.totalorder %s21, 0
      %p105 = por %p103, %p104
      %p106 = scmp.ne.s32.totalorder %s94, %s95
      %p107 = scmp.eq.s32.totalorder %s22, 3
      %p108 = por %p106, %p107
      %p110 = scmp.ne.s32.totalorder %s95, %s109
      %p111 = scmp.eq.s32.totalorder %s22, 0
      %p112 = por %p110, %p111
      %s114 = sadd.s32 %s113, 1
      %p117 = scmp.eq.s32.totalorder %s16, 3
      %p118 = scmp.ne.s32.totalorder %s113, %s115
      %p119 = scmp.eq.s32.totalorder %s16, 0
      %p120 = por %p118, %p119
      %p121 = scmp.ne.s32.totalorder %s113, %s115
      %p122 = scmp.eq.s32.totalorder %s21, 3
      %p123 = por %p121, %p122
      %p124 = scmp.ne.s32.totalorder %s115, %s116
      %p125 = scmp.eq.s32.totalorder %s21, 0
      %p126 = por %p124, %p125
      %p127 = scmp.ne.s32.totalorder %s115, %s116
      %p128 = scmp.eq.s32.totalorder %s22, 3
      %p129 = por %p127, %p128
      %p131 = scmp.ne.s32.totalorder %s116, %s130
      %p132 = scmp.eq.s32.totalorder %s22, 0
      %p133 = por %p131, %p132
      %s135 = sadd.s32 %s134, 1
      %p138 = scmp.eq.s32.totalorder %s16, 3
      %p139 = scmp.ne.s32.totalorder %s134, %s136
      %p140 = scmp.eq.s32.totalorder %s16, 0
      %p141 = por %p139, %p140
      %p142 = scmp.ne.s32.totalorder %s134, %s136
      %p143 = scmp.eq.s32.totalorder %s21, 3
      %p144 = por %p142, %p143
      %p145 = scmp.ne.s32.totalorder %s136, %s137
      %p146 = scmp.eq.s32.totalorder %s21, 0
      %p147 = por %p145, %p146
      %p148 = scmp.ne.s32.totalorder %s136, %s137
      %p149 = scmp.eq.s32.totalorder %s22, 3
      %p150 = por %p148, %p149
      %p152 = scmp.ne.s32.totalorder %s137, %s151
      %p153 = scmp.eq.s32.totalorder %s22, 0
      %p154 = por %p152, %p153
      %s156 = sadd.s32 %s155, 1
      %p159 = scmp.eq.s32.totalorder %s16, 3
      %p160 = scmp.ne.s32.totalorder %s155, %s157
      %p161 = scmp.eq.s32.totalorder %s16, 0
      %p162 = por %p160, %p161
      %p163 = scmp.ne.s32.totalorder %s155, %s157
      %p164 = scmp.eq.s32.totalorder %s21, 3
      %p165 = por %p163, %p164
      %p166 = scmp.ne.s32.totalorder %s157, %s158
      %p167 = scmp.eq.s32.totalorder %s21, 0
      %p168 = por %p166, %p167
      %p169 = scmp.ne.s32.totalorder %s157, %s158
      %p170 = scmp.eq.s32.totalorder %s22, 3
      %p171 = por %p169, %p170
      %p173 = scmp.ne.s32.totalorder %s158, %s172
      %p174 = scmp.eq.s32.totalorder %s22, 0
      %p175 = por %p173, %p174
      %s176 = ssub.s32 %s16, %s23
      %p177 = scmp.eq.s32.totalorder %s176, 0
      %s179 = sadd.s32 %s178, 1
      %s180 = scalar_select %p177, %s178, %s179
      %p183 = pneg %p177
      %p184 = scmp.eq.s32.totalorder %s16, 3
      %p185 = por %p183, %p184
      %p186 = scmp.ne.s32.totalorder %s178, %s181
      %p187 = scmp.eq.s32.totalorder %s16, 0
      %p188 = por %p186, %p187
      %p189 = scmp.ne.s32.totalorder %s178, %s181
      %p190 = scmp.eq.s32.totalorder %s21, 3
      %p191 = por %p189, %p190
      %p192 = scmp.ne.s32.totalorder %s181, %s182
      %p193 = scmp.eq.s32.totalorder %s21, 0
      %p194 = por %p192, %p193
      %p195 = scmp.ne.s32.totalorder %s181, %s182
      %p196 = scmp.eq.s32.totalorder %s22, 3
      %p197 = por %p195, %p196
      %p199 = scmp.ne.s32.totalorder %s182, %s198
      %p200 = scmp.eq.s32.totalorder %s22, 0
      %p201 = por %p199, %p200
      %p202 = scmp.le.s32.totalorder 1, %s16
      %p203 = scmp.lt.s32.totalorder %s16, 5
      %p204 = pnand %p202, %p203
      %p205 = pneg %p204
      // Predicated region
      $region9: #{tpu_custom_call.1} parent=5 // pred_check
        _
      $region10: #{tpu_custom_call.1} parent=5 // pred_check_branch
        %207 = sbr.rel (%p204) target = $region12
      $region11: #{tpu_custom_call.1} parent=5 // pred_region
        %s208 = ssub.s32 %s16, 1
        // Predicated region
        $region13: #{tpu_custom_call.1} parent=11 // pred_check
          %p209 = pneg %p63
        $region14: #{tpu_custom_call.1} parent=11 // pred_check_branch
          %211 = sbr.rel (%p209) target = $region16
        $region15: #{tpu_custom_call.1} parent=11 // pred_region
          _
        $region16: #{tpu_custom_call.1} parent=11 // pred_fallthru
          _
        // Predicated region
        $region17: #{tpu_custom_call.1} parent=11 // pred_check
          %p212 = pneg %p84
        $region18: #{tpu_custom_call.1} parent=11 // pred_check_branch
          %214 = sbr.rel (%p212) target = $region20
        $region19: #{tpu_custom_call.1} parent=11 // pred_region
          _
        $region20: #{tpu_custom_call.1} parent=11 // pred_fallthru
          _
        // Predicated region
        $region21: #{tpu_custom_call.1} parent=11 // pred_check
          %p215 = pneg %p105
        $region22: #{tpu_custom_call.1} parent=11 // pred_check_branch
          %217 = sbr.rel (%p215) target = $region24
        $region23: #{tpu_custom_call.1} parent=11 // pred_region
          _
        $region24: #{tpu_custom_call.1} parent=11 // pred_fallthru
          _
        // Predicated region
        $region25: #{tpu_custom_call.1} parent=11 // pred_check
          %p218 = pneg %p126
        $region26: #{tpu_custom_call.1} parent=11 // pred_check_branch
          %220 = sbr.rel (%p218) target = $region28
        $region27: #{tpu_custom_call.1} parent=11 // pred_region
          _
        $region28: #{tpu_custom_call.1} parent=11 // pred_fallthru
          _
        // Predicated region
        $region29: #{tpu_custom_call.1} parent=11 // pred_check
          %p221 = pneg %p147
        $region30: #{tpu_custom_call.1} parent=11 // pred_check_branch
          %223 = sbr.rel (%p221) target = $region32
        $region31: #{tpu_custom_call.1} parent=11 // pred_region
          _
        $region32: #{tpu_custom_call.1} parent=11 // pred_fallthru
          _
        // Predicated region
        $region33: #{tpu_custom_call.1} parent=11 // pred_check
          %p224 = pneg %p168
        $region34: #{tpu_custom_call.1} parent=11 // pred_check_branch
          %226 = sbr.rel (%p224) target = $region36
        $region35: #{tpu_custom_call.1} parent=11 // pred_region
          _
        $region36: #{tpu_custom_call.1} parent=11 // pred_fallthru
          _
      $region12: #{tpu_custom_call.1} parent=5 // pred_fallthru
        _
      %p227 = scmp.lt.s32.totalorder %s16, 4
      // Predicated region
      $region37: #{tpu_custom_call.1} parent=5 // pred_check
        %p228 = pneg %p227
      $region38: #{tpu_custom_call.1} parent=5 // pred_check_branch
        %230 = sbr.rel (%p228) target = $region40
      $region39: #{tpu_custom_call.1} parent=5 // pred_region
        // Predicated region
        $region41: #{tpu_custom_call.1} parent=39 // pred_check
          %p231 = pneg %p36
        $region42: #{tpu_custom_call.1} parent=39 // pred_check_branch
          %233 = sbr.rel (%p231) target = $region44
        $region43: #{tpu_custom_call.1} parent=39 // pred_region
          %s234 = smul.u32 8, %s16
          %p235 = scmp.lt.s32.totalorder %s234, 31
          %s236 = scalar_select %p235, %s234, 31
          %s237 = smul.addr %s236, 4
          %s238 = scalar_lea.vmem %s0, %s237
          %s239 = smul.u32 8, %s16
        $region44: #{tpu_custom_call.1} parent=39 // pred_fallthru
          _
      $region40: #{tpu_custom_call.1} parent=5 // pred_fallthru
        _
      %p240 = scmp.le.s32.totalorder 1, %s16
      %p241 = scmp.lt.s32.totalorder %s16, 5
      %p242 = pnand %p240, %p241
      %p243 = pneg %p242
      // Predicated region
      $region45: #{tpu_custom_call.1} parent=5 // pred_check
        _
      $region46: #{tpu_custom_call.1} parent=5 // pred_check_branch
        %245 = sbr.rel (%p242) target = $region48
      $region47: #{tpu_custom_call.1} parent=5 // pred_region
        %s246 = ssub.s32 %s16, 1
        %s247 = smul.u32 8, %s21
        %p248 = scmp.lt.s32.totalorder %s247, 31
        %s249 = scalar_select %p248, %s247, 31
        %s250 = smul.addr %s249, 4
        %s251 = scalar_lea.vmem %s0, %s250
        %p252 = pneg %p42
        %p253 = pneg %p39
        %p254 = pneg %p63
        %p255 = pneg %p60
        %p256 = pneg %p84
        %p257 = pneg %p81
        %p258 = pneg %p105
        %p259 = pneg %p102
        %p260 = pneg %p126
        %p261 = pneg %p123
        %p262 = pneg %p147
        %p263 = pneg %p144
        %p264 = pneg %p168
        %p265 = pneg %p165
        %p266 = pneg %p194
        %p267 = pneg %p191
        %s268 = sand.u32 %s181, 1
        %s269 = scalar_lea.sflag [#allocation3], %s268
        %s270 = sand.u32 %s181, 1
        %s271 = smul.addr %s270, 64
        %s272 = scalar_lea.vmem [#allocation2], %s271
        %s273 = smul.u32 8, %s21
        %p274 = scmp.lt.s32.totalorder %s273, 31
        %s275 = scalar_select %p274, %s273, 31
        %s276 = smul.addr %s275, 4
        %s277 = scalar_lea.vmem %s0, %s276
        %s278 = smul.u32 8, %s21
        %s279 = smul.u32 8, %s21
        %v281 = vld [vmem:[%s277] sm:$0xf]
        %v282 = vld [vmem:[%s277 + $0x4] sm:$0xf]
        %v283 = vld [vmem:[%s277 + $0x8] sm:$0xf]
        %v284 = vld [vmem:[%s277 + $0xc] sm:$0xf]
        %v285 = vld [vmem:[%s277 + $0x10] sm:$0xf]
        %v286 = vld [vmem:[%s277 + $0x14] sm:$0xf]
        %v287 = vld [vmem:[%s277 + $0x18] sm:$0xf]
        %v288 = vld [vmem:[%s277 + $0x1c] sm:$0xf]
        %v289 = vld [vmem:[%s1] sm:$0xf]
        %v290 = vld [vmem:[%s1 + $0x4] sm:$0xf]
        %v291 = vld [vmem:[%s1 + $0x8] sm:$0xf]
        %v292 = vld [vmem:[%s1 + $0xc] sm:$0xf]
        %v293 = vld [vmem:[%s2] sm:$0x1]
        %v294 = vunpack.c.l.bf16 %v293
        %v295 = vperm.slane %v294, 0
        %v304 = vunpack.c.l.b16 %v281
        %v305 = vunpack.c.l.b16 %v282
        %v306 = vunpack.c.l.b16 %v283
        %v307 = vunpack.c.l.b16 %v284
        %v308 = vunpack.c.l.b16 %v285
        %v309 = vunpack.c.l.b16 %v286
        %v310 = vunpack.c.l.b16 %v287
        %v311 = vunpack.c.l.b16 %v288
        %v312 = vpack.c.b16 %v305, %v304
        %v313 = vpack.c.b16 %v307, %v306
        %v314 = vpack.c.b16 %v309, %v308
        %v315 = vpack.c.b16 %v311, %v310
        %v320 = vunpack.c.l.b16 %v289
        %v321 = vunpack.c.l.b16 %v290
        %v322 = vunpack.c.l.b16 %v291
        %v323 = vunpack.c.l.b16 %v292
        %v324 = vpack.c.b16 %v321, %v320
        %v325 = vpack.c.b16 %v323, %v322
        %vm328 = vcmask 261120
        %v330 = vsel %vm328, %v312, 0
        %v333 = vsel %vm328, %v313, 0
        %v336 = vsel %vm328, %v314, 0
        %v339 = vsel %vm328, %v315, 0
        %341 = vmatpush.bf16.msra.mxu0 0
        %342 = vmatpush.bf16.msra.mxu0 0
        %343 = vmatpush.bf16.msra.mxu0 0
        %344 = vmatpush.bf16.msra.mxu0 0
        %345 = vmatpush.bf16.msra.mxu0 0
        %346 = vmatpush.bf16.msra.mxu0 0
        %347 = vmatpush.bf16.msra.mxu0 %v325
        %348 = vmatpush.bf16.msra.mxu0 %v324
        %349 = vmatmul.bf16.gmra.mxu0 %v330
        %v350 = vpop.f32.mrf.mxu0
        %v351 = vadd.f32 %v295, %v350
        %v352 = vpop.f32.mrf.mxu0
        %v353 = vadd.f32 %v295, %v352
        %354 = vmatmul.bf16.gmra.mxu0 %v333
        %v355 = vpop.f32.mrf.mxu0
        %v356 = vadd.f32 %v295, %v355
        %v357 = vpop.f32.mrf.mxu0
        %v358 = vadd.f32 %v295, %v357
        %359 = vmatmul.bf16.gmra.mxu0 %v336
        %v360 = vpop.f32.mrf.mxu0
        %v361 = vadd.f32 %v295, %v360
        %v362 = vpop.f32.mrf.mxu0
        %v363 = vadd.f32 %v295, %v362
        %364 = vmatmul.bf16.gmra.mxu0 %v339
        %v365 = vpop.f32.mrf.mxu0
        %v366 = vadd.f32 %v295, %v365
        %v367 = vpop.f32.mrf.mxu0
        %v368 = vadd.f32 %v295, %v367
        %369 = vdwg.mxu0
        %vm370 = vcmp.ge.f32.partialorder %v351, 0.0
        %vm371 = vcmp.ge.f32.partialorder %v353, 0.0
        %vm372 = vcmp.ge.f32.partialorder %v356, 0.0
        %vm373 = vcmp.ge.f32.partialorder %v358, 0.0
        %vm374 = vcmp.ge.f32.partialorder %v361, 0.0
        %vm375 = vcmp.ge.f32.partialorder %v363, 0.0
        %vm376 = vcmp.ge.f32.partialorder %v366, 0.0
        %vm377 = vcmp.ge.f32.partialorder %v368, 0.0
        %v378 = vmul.f32 %v351, 0.05
        %v379 = vmul.f32 %v353, 0.05
        %v380 = vmul.f32 %v356, 0.05
        %v381 = vmul.f32 %v358, 0.05
        %v382 = vmul.f32 %v361, 0.05
        %v383 = vmul.f32 %v363, 0.05
        %v384 = vmul.f32 %v366, 0.05
        %v385 = vmul.f32 %v368, 0.05
        %v386 = vsel %vm370, %v351, %v378
        %v387 = vsel %vm371, %v353, %v379
        %v388 = vsel %vm372, %v356, %v380
        %v389 = vsel %vm373, %v358, %v381
        %v390 = vsel %vm374, %v361, %v382
        %v391 = vsel %vm375, %v363, %v383
        %v392 = vsel %vm376, %v366, %v384
        %v393 = vsel %vm377, %v368, %v385
        %v394 = vpack.c.bf16 %v387, %v386
        %v395 = vpack.c.bf16 %v389, %v388
        %v396 = vpack.c.bf16 %v391, %v390
        %v397 = vpack.c.bf16 %v393, %v392
        %v398 = vld [vmem:[%s3] sm:$0xf]
        %v399 = vld [vmem:[%s3 + $0x4] sm:$0xf]
        %v400 = vld [vmem:[%s3 + $0x8] sm:$0xf]
        %v401 = vld [vmem:[%s3 + $0xc] sm:$0xf]
        %v402 = vld [vmem:[%s3 + $0x10] sm:$0xf]
        %v403 = vld [vmem:[%s3 + $0x14] sm:$0xf]
        %v404 = vld [vmem:[%s3 + $0x18] sm:$0xf]
        %v405 = vld [vmem:[%s3 + $0x1c] sm:$0xf]
        %v406 = vld [vmem:[%s3 + $0x20] sm:$0xf]
        %v407 = vld [vmem:[%s3 + $0x24] sm:$0xf]
        %v408 = vld [vmem:[%s3 + $0x28] sm:$0xf]
        %v409 = vld [vmem:[%s3 + $0x2c] sm:$0xf]
        %v410 = vld [vmem:[%s3 + $0x30] sm:$0xf]
        %v411 = vld [vmem:[%s3 + $0x34] sm:$0xf]
        %v412 = vld [vmem:[%s3 + $0x38] sm:$0xf]
        %v413 = vld [vmem:[%s3 + $0x3c] sm:$0xf]
        %v414 = vld [vmem:[%s4] sm:$0x1]
        %v415 = vunpack.c.l.bf16 %v414
        %v416 = vperm.slane %v415, 0
        %v433 = vunpack.c.l.b16 %v398
        %v434 = vunpack.c.l.b16 %v399
        %v435 = vunpack.c.l.b16 %v400
        %v436 = vunpack.c.l.b16 %v401
        %v437 = vunpack.c.l.b16 %v402
        %v438 = vunpack.c.l.b16 %v403
        %v439 = vunpack.c.l.b16 %v404
        %v440 = vunpack.c.l.b16 %v405
        %v441 = vunpack.c.l.b16 %v406
        %v442 = vunpack.c.l.b16 %v407
        %v443 = vunpack.c.l.b16 %v408
        %v444 = vunpack.c.l.b16 %v409
        %v445 = vunpack.c.l.b16 %v410
        %v446 = vunpack.c.l.b16 %v411
        %v447 = vunpack.c.l.b16 %v412
        %v448 = vunpack.c.l.b16 %v413
        %v449 = vpack.c.b16 %v434, %v433
        %v450 = vpack.c.b16 %v436, %v435
        %v451 = vpack.c.b16 %v438, %v437
        %v452 = vpack.c.b16 %v440, %v439
        %v453 = vpack.c.b16 %v442, %v441
        %v454 = vpack.c.b16 %v444, %v443
        %v455 = vpack.c.b16 %v446, %v445
        %v456 = vpack.c.b16 %v448, %v447
        %465 = vmatpush.bf16.msra.mxu0 %v456
        %466 = vmatpush.bf16.msra.mxu0 %v455
        %467 = vmatpush.bf16.msra.mxu0 %v454
        %468 = vmatpush.bf16.msra.mxu0 %v453
        %469 = vmatpush.bf16.msra.mxu0 %v452
        %470 = vmatpush.bf16.msra.mxu0 %v451
        %471 = vmatpush.bf16.msra.mxu0 %v450
        %472 = vmatpush.bf16.msra.mxu0 %v449
        %473 = vmatmul.bf16.gmra.mxu0 %v394
        %v474 = vpop.f32.mrf.mxu0
        %v475 = vadd.f32 %v416, %v474
        %v476 = vpop.f32.mrf.mxu0
        %v477 = vadd.f32 %v416, %v476
        %478 = vmatmul.bf16.gmra.mxu0 %v395
        %v479 = vpop.f32.mrf.mxu0
        %v480 = vadd.f32 %v416, %v479
        %v481 = vpop.f32.mrf.mxu0
        %v482 = vadd.f32 %v416, %v481
        %483 = vmatmul.bf16.gmra.mxu0 %v396
        %v484 = vpop.f32.mrf.mxu0
        %v485 = vadd.f32 %v416, %v484
        %v486 = vpop.f32.mrf.mxu0
        %v487 = vadd.f32 %v416, %v486
        %488 = vmatmul.bf16.gmra.mxu0 %v397
        %v489 = vpop.f32.mrf.mxu0
        %v490 = vadd.f32 %v416, %v489
        %v491 = vpop.f32.mrf.mxu0
        %v492 = vadd.f32 %v416, %v491
        %493 = vdwg.mxu0
        %vm494 = vcmp.ge.f32.partialorder %v475, 0.0
        %vm495 = vcmp.ge.f32.partialorder %v477, 0.0
        %vm496 = vcmp.ge.f32.partialorder %v480, 0.0
        %vm497 = vcmp.ge.f32.partialorder %v482, 0.0
        %vm498 = vcmp.ge.f32.partialorder %v485, 0.0
        %vm499 = vcmp.ge.f32.partialorder %v487, 0.0
        %vm500 = vcmp.ge.f32.partialorder %v490, 0.0
        %vm501 = vcmp.ge.f32.partialorder %v492, 0.0
        %v502 = vmul.f32 %v475, 0.05
        %v503 = vmul.f32 %v477, 0.05
        %v504 = vmul.f32 %v480, 0.05
        %v505 = vmul.f32 %v482, 0.05
        %v506 = vmul.f32 %v485, 0.05
        %v507 = vmul.f32 %v487, 0.05
        %v508 = vmul.f32 %v490, 0.05
        %v509 = vmul.f32 %v492, 0.05
        %v510 = vsel %vm494, %v475, %v502
        %v511 = vsel %vm495, %v477, %v503
        %v512 = vsel %vm496, %v480, %v504
        %v513 = vsel %vm497, %v482, %v505
        %v514 = vsel %vm498, %v485, %v506
        %v515 = vsel %vm499, %v487, %v507
        %v516 = vsel %vm500, %v490, %v508
        %v517 = vsel %vm501, %v492, %v509
        %v518 = vpack.c.bf16 %v511, %v510
        %v519 = vpack.c.bf16 %v513, %v512
        %v520 = vpack.c.bf16 %v515, %v514
        %v521 = vpack.c.bf16 %v517, %v516
        %v522 = vld [vmem:[%s5] sm:$0xf]
        %v523 = vld [vmem:[%s5 + $0x4] sm:$0xf]
        %v524 = vld [vmem:[%s5 + $0x8] sm:$0xf]
        %v525 = vld [vmem:[%s5 + $0xc] sm:$0xf]
        %v526 = vld [vmem:[%s5 + $0x10] sm:$0xf]
        %v527 = vld [vmem:[%s5 + $0x14] sm:$0xf]
        %v528 = vld [vmem:[%s5 + $0x18] sm:$0xf]
        %v529 = vld [vmem:[%s5 + $0x1c] sm:$0xf]
        %v530 = vld [vmem:[%s5 + $0x20] sm:$0xf]
        %v531 = vld [vmem:[%s5 + $0x24] sm:$0xf]
        %v532 = vld [vmem:[%s5 + $0x28] sm:$0xf]
        %v533 = vld [vmem:[%s5 + $0x2c] sm:$0xf]
        %v534 = vld [vmem:[%s5 + $0x30] sm:$0xf]
        %v535 = vld [vmem:[%s5 + $0x34] sm:$0xf]
        %v536 = vld [vmem:[%s5 + $0x38] sm:$0xf]
        %v537 = vld [vmem:[%s5 + $0x3c] sm:$0xf]
        %v538 = vld [vmem:[%s6] sm:$0x1]
        %v539 = vunpack.c.l.bf16 %v538
        %v540 = vperm.slane %v539, 0
        %v557 = vunpack.c.l.b16 %v522
        %v558 = vunpack.c.l.b16 %v523
        %v559 = vunpack.c.l.b16 %v524
        %v560 = vunpack.c.l.b16 %v525
        %v561 = vunpack.c.l.b16 %v526
        %v562 = vunpack.c.l.b16 %v527
        %v563 = vunpack.c.l.b16 %v528
        %v564 = vunpack.c.l.b16 %v529
        %v565 = vunpack.c.l.b16 %v530
        %v566 = vunpack.c.l.b16 %v531
        %v567 = vunpack.c.l.b16 %v532
        %v568 = vunpack.c.l.b16 %v533
        %v569 = vunpack.c.l.b16 %v534
        %v570 = vunpack.c.l.b16 %v535
        %v571 = vunpack.c.l.b16 %v536
        %v572 = vunpack.c.l.b16 %v537
        %v573 = vpack.c.b16 %v558, %v557
        %v574 = vpack.c.b16 %v560, %v559
        %v575 = vpack.c.b16 %v562, %v561
        %v576 = vpack.c.b16 %v564, %v563
        %v577 = vpack.c.b16 %v566, %v565
        %v578 = vpack.c.b16 %v568, %v567
        %v579 = vpack.c.b16 %v570, %v569
        %v580 = vpack.c.b16 %v572, %v571
        %589 = vmatpush.bf16.msra.mxu0 %v580
        %590 = vmatpush.bf16.msra.mxu0 %v579
        %591 = vmatpush.bf16.msra.mxu0 %v578
        %592 = vmatpush.bf16.msra.mxu0 %v577
        %593 = vmatpush.bf16.msra.mxu0 %v576
        %594 = vmatpush.bf16.msra.mxu0 %v575
        %595 = vmatpush.bf16.msra.mxu0 %v574
        %596 = vmatpush.bf16.msra.mxu0 %v573
        %597 = vmatmul.bf16.gmra.mxu0 %v518
        %v598 = vpop.f32.mrf.mxu0
        %v599 = vadd.f32 %v540, %v598
        %v600 = vpop.f32.mrf.mxu0
        %v601 = vadd.f32 %v540, %v600
        %602 = vmatmul.bf16.gmra.mxu0 %v519
        %v603 = vpop.f32.mrf.mxu0
        %v604 = vadd.f32 %v540, %v603
        %v605 = vpop.f32.mrf.mxu0
        %v606 = vadd.f32 %v540, %v605
        %607 = vmatmul.bf16.gmra.mxu0 %v520
        %v608 = vpop.f32.mrf.mxu0
        %v609 = vadd.f32 %v540, %v608
        %v610 = vpop.f32.mrf.mxu0
        %v611 = vadd.f32 %v540, %v610
        %612 = vmatmul.bf16.gmra.mxu0 %v521
        %v613 = vpop.f32.mrf.mxu0
        %v614 = vadd.f32 %v540, %v613
        %v615 = vpop.f32.mrf.mxu0
        %v616 = vadd.f32 %v540, %v615
        %617 = vdwg.mxu0
        %618 = vst [vmem:[%s272] sm:$0xff] %v599
        %619 = vst [vmem:[%s272 + $0x8] sm:$0xff] %v601
        %620 = vst [vmem:[%s272 + $0x10] sm:$0xff] %v604
        %621 = vst [vmem:[%s272 + $0x18] sm:$0xff] %v606
        %622 = vst [vmem:[%s272 + $0x20] sm:$0xff] %v609
        %623 = vst [vmem:[%s272 + $0x28] sm:$0xff] %v611
        %624 = vst [vmem:[%s272 + $0x30] sm:$0xff] %v614
        %625 = vst [vmem:[%s272 + $0x38] sm:$0xff] %v616
        %s626 = sand.u32 %s181, 1
        %s627 = scalar_lea.sflag [#allocation3], %s626
        %s628 = sand.u32 %s181, 1
        %s629 = smul.addr %s628, 64
        %s630 = scalar_lea.vmem [#allocation2], %s629
        // Predicated region
        $region49: #{tpu_custom_call.1} parent=47 // pred_check
          %p631 = pneg %p191
        $region50: #{tpu_custom_call.1} parent=47 // pred_check_branch
          %633 = sbr.rel (%p631) target = $region52
        $region51: #{tpu_custom_call.1} parent=47 // pred_region
          %s634 = smul.u32 8, %s21
          %636 = vsyncadd %s627, 0
          %s637 = smul.addr %s634, 8
          %s638 = scalar_lea.hbm %s7, %s637
          %s639 = sshll.u32 %s630, 4
          %s640 = int_to_ptr.vmem [resolvable:$true] %s639
          %s641 = sshll.u32 %s638, 4
          %s642 = int_to_ptr.hbm [resolvable:$true] %s641
          %647 = dma.vmem_to_hbm [thread:$0]  %s640, 1024, %s642, %s627, 128, 128, 8
        $region52: #{tpu_custom_call.1} parent=47 // pred_fallthru
          _
      $region48: #{tpu_custom_call.1} parent=5 // pred_fallthru
        _
      %p648 = scmp.le.s32.totalorder 2, %s16
      // Predicated region
      $region53: #{tpu_custom_call.1} parent=5 // pred_check
        %p649 = pneg %p648
      $region54: #{tpu_custom_call.1} parent=5 // pred_check_branch
        %651 = sbr.rel (%p649) target = $region56
      $region55: #{tpu_custom_call.1} parent=5 // pred_region
        %s652 = ssub.s32 %s16, 2
        // Predicated region
        $region57: #{tpu_custom_call.1} parent=55 // pred_check
          %p653 = pneg %p197
        $region58: #{tpu_custom_call.1} parent=55 // pred_check_branch
          %655 = sbr.rel (%p653) target = $region60
        $region59: #{tpu_custom_call.1} parent=55 // pred_region
          %s656 = sand.u32 %s182, 1
          %s657 = scalar_lea.sflag [#allocation3], %s656
          %s658 = sand.u32 %s182, 1
          %s659 = smul.addr %s658, 64
          %s660 = scalar_lea.vmem [#allocation2], %s659
          %662 = dma.done %s657, 1024
        $region60: #{tpu_custom_call.1} parent=55 // pred_fallthru
          _
      $region56: #{tpu_custom_call.1} parent=5 // pred_fallthru
        _
    $region6: #{tpu_custom_call.1} parent=1 // loop_footer
      %s20 = sadd.s32 1, %s16
    $region7: #{tpu_custom_call.1} parent=1 // loop_footer_branch
      %15 = sbr.rel target = $region3
    $region8: #{tpu_custom_call.1} parent=1 // loop_exit
      _
    %663 = vsyncpa [#allocation3], 1
    %s664 = scalar_lea.sflag [#allocation3], 1
    %665 = vsyncpa %s664, 1

</llo_original>
